<compile_context>
chip_gen: v5e
topology: v5e:2x2
jax: 0.10.0
libtpu: 0.0.40
codegen_flags: <defaults>
</compile_context>

<pallas_src>
import functools

import jax
import jax.numpy as jnp
from jax import lax
from jax.experimental import pallas as pl
from jax.experimental.pallas import tpu as pltpu


def _round_up(x, m):
    return (x + m - 1) // m * m


# ----------------------------- Pallas kernel --------------------------------
def block_kernel(x_ref, w_ref, mask_ref, o_ref, *, shifts, lo, inv_p,
                 neg_slope, eps):
    """Fused conv(4x4, reflect pad=1, stride) + InstanceNorm2d + LeakyReLU(0.2).

    x_ref   : (1, Cg, Lin_pad)  bf16  phase-decomposed, spatially-flattened image
    w_ref   : (G, tco, Cg)      bf16  conv weights regrouped per flat-shift group
    mask_ref: (1, Lo_pad)       f32   1.0 at valid output positions, else 0.0
    o_ref   : (1, tco, Lo_pad)  bf16  output; lane axis = flattened (Ho, Wph) + pad
    """
    # Convolution: sum of G matmuls on contiguous, statically-shifted slices
    # of the flattened phase tensor (MXU, bf16 in / f32 accumulate).
    acc = None
    for g, shift in enumerate(shifts):              # static unrolled, G <= 16
        xg = x_ref[0, :, pl.ds(shift, lo)]          # (Cg, Lo_pad) contiguous load
        contrib = jnp.dot(w_ref[g], xg, preferred_element_type=jnp.float32)
        acc = contrib if acc is None else acc + contrib   # (tco, Lo_pad) f32

    mask = mask_ref[...]                             # (1, Lo_pad) f32

    # InstanceNorm2d(affine=False), biased variance, two-pass for accuracy.
    mean = jnp.sum(acc * mask, axis=-1, keepdims=True) * inv_p   # (tco, 1)
    cent = (acc - mean) * mask                       # invalid positions -> 0
    var = jnp.sum(cent * cent, axis=-1, keepdims=True) * inv_p
    y = cent * lax.rsqrt(var + eps)

    # LeakyReLU(0.2)
    o_ref[0] = jnp.maximum(y, neg_slope * y).astype(o_ref.dtype)


# ------------------------------ JAX glue -------------------------------------
def block_forward(x_nchw, weight, bias, stride):
    """x_nchw: (N, Cin, H, W); weight: (Cout, Cin, 4, 4); bias: (Cout,)."""
    # Conv bias is mathematically cancelled by InstanceNorm2d(affine=False).
    del bias
    K = 4
    s = int(stride)
    assert K % s == 0, "kernel_size=4 requires stride in {1, 2, 4}"
    N, Cin, H, W = x_nchw.shape
    Cout = weight.shape[0]
    q = K // s                 # shift-group extent per spatial dim
    G = q * q                  # number of shift groups (matmuls per image)
    Cg = s * s * Cin           # contraction dim per matmul (all stride phases)

    Ho = (H + 2 - K) // s + 1
    Wo = (W + 2 - K) // s + 1

    # reflect padding = 1 ; cast to bf16 BEFORE any rearrangement.
    xp = jnp.pad(x_nchw, ((0, 0), (0, 0), (1, 1), (1, 1)),
                 mode="reflect").astype(jnp.bfloat16)
    Hp, Wp = H + 2, W + 2
    # zero-pad bottom/right so spatial dims divide the stride (never read by
    # valid outputs).
    Hp2, Wp2 = _round_up(Hp, s), _round_up(Wp, s)
    if (Hp2, Wp2) != (Hp, Wp):
        xp = jnp.pad(xp, ((0, 0), (0, 0), (0, Hp2 - Hp), (0, Wp2 - Wp)))
    Hph, Wph = Hp2 // s, Wp2 // s

    # stride-phase (space-to-depth) decomposition: (N, s*s*Cin, Hph, Wph)
    #   xs[n, (rh*s+rw)*Cin + ci, u, v] == xp[n, ci, s*u + rh, s*v + rw]
    xs = xp.reshape(N, Cin, Hph, s, Wph, s)
    xs = jnp.transpose(xs, (0, 3, 5, 1, 2, 4)).reshape(N, Cg, Hph, Wph)

    # flatten spatial; pad lane axes to multiples of 128.
    Lo = Ho * Wph                                   # flat output span
    Lo_pad = _round_up(Lo, 128)
    shift_max = (q - 1) * Wph + (q - 1)
    Lin_pad = _round_up(max(Hph * Wph, shift_max + Lo_pad), 128)
    xs_flat = jnp.pad(xs.reshape(N, Cg, Hph * Wph),
                      ((0, 0), (0, 0), (0, Lin_pad - Hph * Wph)))

    # weights regrouped: w_g[qh*q+qw, co, (rh*s+rw)*Cin+ci] = W[co, ci, qh*s+rh, qw*s+rw]
    wr = weight.reshape(Cout, Cin, q, s, q, s)
    w_g = jnp.transpose(wr, (2, 4, 0, 3, 5, 1)).reshape(G, Cout, Cg)
    w_g = w_g.astype(jnp.bfloat16)

    # validity mask over the flat output axis (Ho rows of Wo valid columns,
    # row stride = Wph).
    idx = jnp.arange(Lo_pad)
    mask = (((idx // Wph) < Ho) & ((idx % Wph) < Wo)).astype(jnp.float32)
    mask = mask.reshape(1, Lo_pad)

    shifts = tuple(qh * Wph + qw for qh in range(q) for qw in range(q))

    tco = Cout if Cout <= 256 else 256     # per-channel norm => Cout tiles are independent
    assert Cout % tco == 0

    kernel = functools.partial(
        block_kernel, shifts=shifts, lo=Lo_pad,
        inv_p=1.0 / float(Ho * Wo), neg_slope=0.2, eps=1e-5)

    out = pl.pallas_call(
        kernel,
        out_shape=jax.ShapeDtypeStruct((N, Cout, Lo_pad), jnp.bfloat16),
        grid_spec=pltpu.PrefetchScalarGridSpec(
            num_scalar_prefetch=0,
            grid=(N, Cout // tco),
            in_specs=[
                pl.BlockSpec((1, Cg, Lin_pad), lambda n, c: (n, 0, 0)),
                pl.BlockSpec((G, tco, Cg), lambda n, c: (0, c, 0)),
                pl.BlockSpec((1, Lo_pad), lambda n, c: (0, 0)),
            ],
            out_specs=pl.BlockSpec((1, tco, Lo_pad), lambda n, c: (n, c, 0)),
        ),
        compiler_params=pltpu.CompilerParams(
            dimension_semantics=("parallel", "parallel"),
            vmem_limit_bytes=48 * 1024 * 1024,
        ),
    )(xs_flat, w_g, mask)

    # (N, Cout, Lo_pad) -> (N, Cout, Ho, Wo): cheap slice + reshape, no transpose.
    out = out[:, :, :Lo].reshape(N, Cout, Ho, Wph)[:, :, :, :Wo]
    return out.astype(jnp.float32)


# --------------------------- pure-JAX reference -------------------------------
def block_reference(x_nchw, weight, bias, stride):
    xp = jnp.pad(x_nchw, ((0, 0), (0, 0), (1, 1), (1, 1)), mode="reflect")
    y = lax.conv_general_dilated(
        xp.astype(jnp.float32), weight.astype(jnp.float32),
        window_strides=(stride, stride), padding="VALID",
        dimension_numbers=("NCHW", "OIHW", "NCHW"))
    y = y + bias.reshape(1, -1, 1, 1)
    mean = jnp.mean(y, axis=(2, 3), keepdims=True)
    var = jnp.mean((y - mean) ** 2, axis=(2, 3), keepdims=True)
    y = (y - mean) * lax.rsqrt(var + 1e-5)
    return jnp.where(y >= 0, y, 0.2 * y)


# --------------------------------- main ---------------------------------------
if __name__ == "__main__":
    key = jax.random.PRNGKey(0)
    k_x, k_w, k_b = jax.random.split(key, 3)

    N, Cin, H, W = 2, 4, 16, 16
    Cout, stride = 8, 2

    x = jax.random.normal(k_x, (N, Cin, H, W), dtype=jnp.float32)
    fan_in = Cin * 4 * 4
    weight = jax.random.normal(k_w, (Cout, Cin, 4, 4), dtype=jnp.float32) * (1.0 / fan_in) ** 0.5
    bias = jax.random.normal(k_b, (Cout,), dtype=jnp.float32) * 0.1

    out = block_forward(x, weight, bias, stride)
    jax.block_until_ready(out)

    ref = block_reference(x, weight, bias, stride)
    assert out.shape == ref.shape == (N, Cout, 8, 8)
    # bf16 MXU inputs + bf16 output (f32 accumulate/stats): tolerance loosened.
    assert jnp.allclose(out, ref, atol=5e-2, rtol=5e-2)

    print("KERNEL_OK")
</pallas_src>

<mosaic_0001>
module attributes {stable_mosaic.version = 11 : i64} {
  func.func @block_kernel(%arg0: i32, %arg1: i32, %arg2: memref<1x16x256xbf16, #tpu.memory_space<vmem>>, %arg3: memref<4x8x16xbf16, #tpu.memory_space<vmem>>, %arg4: memref<1x128xf32, #tpu.memory_space<vmem>>, %arg5: memref<1x8x128xbf16, #tpu.memory_space<vmem>>) attributes {dimension_semantics = [#tpu.dimension_semantics<parallel>, #tpu.dimension_semantics<parallel>], iteration_bounds = array<i64: 2, 1>, scalar_prefetch = 0 : i64, scratch_operands = 0 : i64, tpu.core_type = #tpu.core_type<tc>, window_params = [{transform_indices = @transform_0, window_bounds = array<i64: 1, 16, 256>}, {transform_indices = @transform_1, window_bounds = array<i64: 4, 8, 16>}, {pipeline_mode = #tpu.pipeline_mode<synchronous>, transform_indices = @transform_2, window_bounds = array<i64: 1, 128>}, {transform_indices = @transform_3, window_bounds = array<i64: 1, 8, 128>}]} {
    %c0 = arith.constant 0 : index
    %c0_0 = arith.constant 0 : index
    %c0_1 = arith.constant 0 : index
    %0 = vector.load %arg2[%c0, %c0_0, %c0_1] : memref<1x16x256xbf16, #tpu.memory_space<vmem>>, vector<1x16x128xbf16>
    %1 = vector.shape_cast %0 : vector<1x16x128xbf16> to vector<16x128xbf16>
    %c0_2 = arith.constant 0 : index
    %c0_3 = arith.constant 0 : index
    %c0_4 = arith.constant 0 : index
    %2 = vector.load %arg3[%c0_2, %c0_3, %c0_4] : memref<4x8x16xbf16, #tpu.memory_space<vmem>>, vector<1x8x16xbf16>
    %3 = vector.shape_cast %2 : vector<1x8x16xbf16> to vector<8x16xbf16>
    %cst = arith.constant dense<0.000000e+00> : vector<8x128xf32>
    %4 = tpu.matmul %3, %1, %cst {dimension_numbers = #tpu.dot_dimension_numbers<[1], [0], [0], [1], [0, 0, 1, 1], [], []>} : vector<8x16xbf16>, vector<16x128xbf16>, vector<8x128xf32> -> vector<8x128xf32>
    %c0_5 = arith.constant 0 : index
    %c0_6 = arith.constant 0 : index
    %c1 = arith.constant 1 : index
    %5 = vector.load %arg2[%c0_5, %c0_6, %c1] : memref<1x16x256xbf16, #tpu.memory_space<vmem>>, vector<1x16x128xbf16>
    %6 = vector.shape_cast %5 : vector<1x16x128xbf16> to vector<16x128xbf16>
    %c1_7 = arith.constant 1 : index
    %c0_8 = arith.constant 0 : index
    %c0_9 = arith.constant 0 : index
    %7 = vector.load %arg3[%c1_7, %c0_8, %c0_9] : memref<4x8x16xbf16, #tpu.memory_space<vmem>>, vector<1x8x16xbf16>
    %8 = vector.shape_cast %7 : vector<1x8x16xbf16> to vector<8x16xbf16>
    %cst_10 = arith.constant dense<0.000000e+00> : vector<8x128xf32>
    %9 = tpu.matmul %8, %6, %cst_10 {dimension_numbers = #tpu.dot_dimension_numbers<[1], [0], [0], [1], [0, 0, 1, 1], [], []>} : vector<8x16xbf16>, vector<16x128xbf16>, vector<8x128xf32> -> vector<8x128xf32>
    %10 = arith.addf %4, %9 : vector<8x128xf32>
    %c0_11 = arith.constant 0 : index
    %c0_12 = arith.constant 0 : index
    %c9 = arith.constant 9 : index
    %11 = vector.load %arg2[%c0_11, %c0_12, %c9] : memref<1x16x256xbf16, #tpu.memory_space<vmem>>, vector<1x16x128xbf16>
    %12 = vector.shape_cast %11 : vector<1x16x128xbf16> to vector<16x128xbf16>
    %c2 = arith.constant 2 : index
    %c0_13 = arith.constant 0 : index
    %c0_14 = arith.constant 0 : index
    %13 = vector.load %arg3[%c2, %c0_13, %c0_14] : memref<4x8x16xbf16, #tpu.memory_space<vmem>>, vector<1x8x16xbf16>
    %14 = vector.shape_cast %13 : vector<1x8x16xbf16> to vector<8x16xbf16>
    %cst_15 = arith.constant dense<0.000000e+00> : vector<8x128xf32>
    %15 = tpu.matmul %14, %12, %cst_15 {dimension_numbers = #tpu.dot_dimension_numbers<[1], [0], [0], [1], [0, 0, 1, 1], [], []>} : vector<8x16xbf16>, vector<16x128xbf16>, vector<8x128xf32> -> vector<8x128xf32>
    %16 = arith.addf %10, %15 : vector<8x128xf32>
    %c0_16 = arith.constant 0 : index
    %c0_17 = arith.constant 0 : index
    %c10 = arith.constant 10 : index
    %17 = vector.load %arg2[%c0_16, %c0_17, %c10] : memref<1x16x256xbf16, #tpu.memory_space<vmem>>, vector<1x16x128xbf16>
    %18 = vector.shape_cast %17 : vector<1x16x128xbf16> to vector<16x128xbf16>
    %c3 = arith.constant 3 : index
    %c0_18 = arith.constant 0 : index
    %c0_19 = arith.constant 0 : index
    %19 = vector.load %arg3[%c3, %c0_18, %c0_19] : memref<4x8x16xbf16, #tpu.memory_space<vmem>>, vector<1x8x16xbf16>
    %20 = vector.shape_cast %19 : vector<1x8x16xbf16> to vector<8x16xbf16>
    %cst_20 = arith.constant dense<0.000000e+00> : vector<8x128xf32>
    %21 = tpu.matmul %20, %18, %cst_20 {dimension_numbers = #tpu.dot_dimension_numbers<[1], [0], [0], [1], [0, 0, 1, 1], [], []>} : vector<8x16xbf16>, vector<16x128xbf16>, vector<8x128xf32> -> vector<8x128xf32>
    %22 = arith.addf %16, %21 : vector<8x128xf32>
    %c0_21 = arith.constant 0 : index
    %c0_22 = arith.constant 0 : index
    %23 = vector.load %arg4[%c0_21, %c0_22] : memref<1x128xf32, #tpu.memory_space<vmem>>, vector<1x128xf32>
    %24 = vector.broadcast %23 : vector<1x128xf32> to vector<8x128xf32>
    %25 = arith.mulf %22, %24 : vector<8x128xf32>
    %cst_23 = arith.constant dense<0.000000e+00> : vector<8xf32>
    %26 = vector.multi_reduction <add>, %25, %cst_23 [1] : vector<8x128xf32> to vector<8xf32>
    %27 = vector.shape_cast %26 : vector<8xf32> to vector<8x1xf32>
    %cst_24 = arith.constant 1.562500e-02 : f32
    %28 = vector.broadcast %cst_24 : f32 to vector<8x1xf32>
    %29 = arith.mulf %27, %28 : vector<8x1xf32>
    %30 = vector.broadcast %29 : vector<8x1xf32> to vector<8x128xf32>
    %31 = arith.subf %22, %30 : vector<8x128xf32>
    %32 = vector.broadcast %23 : vector<1x128xf32> to vector<8x128xf32>
    %33 = arith.mulf %31, %32 : vector<8x128xf32>
    %34 = arith.mulf %33, %33 : vector<8x128xf32>
    %cst_25 = arith.constant dense<0.000000e+00> : vector<8xf32>
    %35 = vector.multi_reduction <add>, %34, %cst_25 [1] : vector<8x128xf32> to vector<8xf32>
    %36 = vector.shape_cast %35 : vector<8xf32> to vector<8x1xf32>
    %cst_26 = arith.constant 1.562500e-02 : f32
    %37 = vector.broadcast %cst_26 : f32 to vector<8x1xf32>
    %38 = arith.mulf %36, %37 : vector<8x1xf32>
    %cst_27 = arith.constant 9.99999974E-6 : f32
    %39 = vector.broadcast %cst_27 : f32 to vector<8x1xf32>
    %40 = arith.addf %38, %39 : vector<8x1xf32>
    %41 = math.rsqrt %40 : vector<8x1xf32>
    %42 = vector.broadcast %41 : vector<8x1xf32> to vector<8x128xf32>
    %43 = arith.mulf %33, %42 : vector<8x128xf32>
    %cst_28 = arith.constant 2.000000e-01 : f32
    %44 = vector.broadcast %cst_28 : f32 to vector<8x128xf32>
    %45 = arith.mulf %44, %43 : vector<8x128xf32>
    %46 = arith.maximumf %43, %45 : vector<8x128xf32>
    %47 = arith.truncf %46 : vector<8x128xf32> to vector<8x128xbf16>
    %c0_29 = arith.constant 0 : index
    %c0_30 = arith.constant 0 : index
    %c0_31 = arith.constant 0 : index
    %48 = vector.load %arg5[%c0_29, %c0_30, %c0_31] : memref<1x8x128xbf16, #tpu.memory_space<vmem>>, vector<1x8x128xbf16>
    %49 = vector.shape_cast %48 : vector<1x8x128xbf16> to vector<8x128xbf16>
    %50 = vector.shape_cast %47 : vector<8x128xbf16> to vector<1x8x128xbf16>
    tpu.vector_store %arg5[%c0_29, %c0_30, %c0_31], %50 {strides = array<i32>} : memref<1x8x128xbf16, #tpu.memory_space<vmem>>, vector<1x8x128xbf16>,
    return
  }
  func.func @transform_0(%arg0: i32, %arg1: i32) -> (i32, i32, i32) {
    %c0_i32 = arith.constant 0 : i32
    %c0_i32_0 = arith.constant 0 : i32
    %c0_i32_1 = arith.constant 0 : i32
    return %arg0, %c0_i32, %c0_i32_0 : i32, i32, i32
  }
  func.func @transform_1(%arg0: i32, %arg1: i32) -> (i32, i32, i32) {
    %c0_i32 = arith.constant 0 : i32
    %c0_i32_0 = arith.constant 0 : i32
    %c0_i32_1 = arith.constant 0 : i32
    return %c0_i32, %arg1, %c0_i32_0 : i32, i32, i32
  }
  func.func @transform_2(%arg0: i32, %arg1: i32) -> (i32, i32) {
    %c0_i32 = arith.constant 0 : i32
    %c0_i32_0 = arith.constant 0 : i32
    %c0_i32_1 = arith.constant 0 : i32
    return %c0_i32, %c0_i32_0 : i32, i32
  }
  func.func @transform_3(%arg0: i32, %arg1: i32) -> (i32, i32, i32) {
    %c0_i32 = arith.constant 0 : i32
    %c0_i32_0 = arith.constant 0 : i32
    return %arg0, %arg1, %c0_i32 : i32, i32, i32
  }
}

</mosaic_0001>

<llo_original>
// kernel: tpu_custom_call.1
$region0: #{tpu_custom_call.1}
  #allocation0 [shape = 'u32[]', space=smem, size = 0x4, offset = 0x4, fixed_abs, tag = 'smem constant byte address 0x4 - core index']
  #allocation1 [shape = 'u32[72,128]{1,0:T(1,128)}', space=vmem, size = 0x9000, scoped, tag = 'internal scratch']
  %s0 = inlined_call_operand.hbm [shape: bf16[2,16,256], index: 0, kind: input, shape index: {}]
  %s1 = inlined_call_operand.hbm [shape: bf16[4,8,16], index: 1, kind: input, shape index: {}]
  %s2 = inlined_call_operand.vmem [shape: f32[1,128], index: 2, kind: input, shape index: {}]
  %s3 = inlined_call_operand.hbm [shape: bf16[2,8,128], index: 3, kind: output, shape index: {}]
  %s4 = sld [smem:[#allocation0]]
  $region53: #{tpu_custom_call.1} parent=0
    _
  %s6 = ssub.s32 1, %s4
  %s7 = scalar_select 0, %s6, %s4
  $region1: #{tpu_custom_call.1} parent=0
    #allocation2 [shape = 'u8[16384]{0}', space=vmem, size = 0x4000, scoped, tag = 'input window, operand 0']
    #allocation3 [shape = 's32[2]{0}', space=sflag, size = 0x8, scoped, tag = 'scoped memory for tpu_custom_call.1']
    #allocation4 [shape = 's32[2]{0}', space=sflag, size = 0x8, scoped, tag = 'scoped memory for tpu_custom_call.1']
    #allocation5 [shape = 'u8[8192]{0}', space=vmem, size = 0x2000, scoped, tag = 'input window, operand 1, single buffered']
    #allocation6 [shape = 's32[1]{0}', space=sflag, size = 0x4, scoped, tag = 'scoped memory for tpu_custom_call.1']
    #allocation7 [shape = 'u8[4096]{0}', space=vmem, size = 0x1000, scoped, tag = 'output window, operand 0']
    %8 = vsyncpa [#allocation3], 0
    %s9 = scalar_lea.sflag [#allocation3], 1
    %10 = vsyncpa %s9, 0
    %11 = vsyncpa [#allocation6], 0
    %12 = vsyncpa [#allocation4], 0
    %s13 = scalar_lea.sflag [#allocation4], 1
    %14 = vsyncpa %s13, 0
    loop: start=0, step=1, limit=4
    $region2: #{tpu_custom_call.1} parent=1 // loop_pre_header
      _
    $region3: #{tpu_custom_call.1} parent=1 // loop_header
      %s16 = sphi 0, %s20
      %p17 = scmp.ge.s32.totalorder %s16, 4
      %s23 = sphi 0, %s35
      %s24 = sphi 0, %s31
      %s25 = sphi 0, %s23
      %s26 = sphi 0, %s24
      %s27 = sphi 0, %s25
      %s28 = sphi 0, %s26
      %s38 = sphi 0, %s40
      %s41 = sphi 0, %s38
      %s42 = sphi 0, %s41
      %s58 = sphi 0, %s42
      %s64 = sphi 0, %s66
      %s67 = sphi 0, %s64
      %s68 = sphi 0, %s67
      %s84 = sphi 0, %s68
      %s88 = sphi 0, %s88
      %s90 = sphi 0, %s88
      %s91 = sphi 0, %s90
      %s105 = sphi 0, %s91
      %s113 = sphi 0, %s115
      %s116 = sphi 0, %s113
      %s117 = sphi 0, %s116
      %s133 = sphi 0, %s117
    $region4: #{tpu_custom_call.1} parent=1 // loop_header_branch
      %19 = sbr.rel (%p17) target = $region8
    $region5: #{tpu_custom_call.1} parent=1 // loop_body
      %s21 = ssub.s32 %s16, 1
      %s22 = ssub.s32 %s16, 2
      %s29 = sadd.s32 1, %s24
      %p30 = scmp.ge.s32.totalorder %s29, 1
      %s31 = scalar_select %p30, 0, %s29
      %s32 = sadd.s32 1, %s23
      %s33 = scalar_select %p30, %s32, %s23
      %p34 = scmp.ge.s32.totalorder %s33, 2
      %s35 = scalar_select %p34, 0, %s33
      %s36 = ssub.s32 %s23, %s35
      %p37 = scmp.eq.s32.totalorder %s36, 0
      %s39 = sadd.s32 %s38, 1
      %s40 = scalar_select %p37, %s38, %s39
      %p43 = pneg %p37
      %p44 = scmp.eq.s32.totalorder %s16, 1
      %p45 = por %p43, %p44
      %p46 = scmp.ne.s32.totalorder %s38, %s41
      %p47 = scmp.eq.s32.totalorder %s16, 0
      %p48 = por %p46, %p47
      %p49 = scmp.ne.s32.totalorder %s38, %s41
      %p50 = scmp.eq.s32.totalorder %s21, 1
      %p51 = por %p49, %p50
      %p52 = scmp.ne.s32.totalorder %s41, %s42
      %p53 = scmp.eq.s32.totalorder %s21, 0
      %p54 = por %p52, %p53
      %p55 = scmp.ne.s32.totalorder %s41, %s42
      %p56 = scmp.eq.s32.totalorder %s22, 1
      %p57 = por %p55, %p56
      %p59 = scmp.ne.s32.totalorder %s42, %s58
      %p60 = scmp.eq.s32.totalorder %s22, 0
      %p61 = por %p59, %p60
      %s62 = ssub.s32 %s24, %s31
      %p63 = scmp.eq.s32.totalorder %s62, 0
      %s65 = sadd.s32 %s64, 1
      %s66 = scalar_select %p63, %s64, %s65
      %p69 = pneg %p63
      %p70 = scmp.eq.s32.totalorder %s16, 1
      %p71 = por %p69, %p70
      %p72 = scmp.ne.s32.totalorder %s64, %s67
      %p73 = scmp.eq.s32.totalorder %s16, 0
      %p74 = por %p72, %p73
      %p75 = scmp.ne.s32.totalorder %s64, %s67
      %p76 = scmp.eq.s32.totalorder %s21, 1
      %p77 = por %p75, %p76
      %p78 = scmp.ne.s32.totalorder %s67, %s68
      %p79 = scmp.eq.s32.totalorder %s21, 0
      %p80 = por %p78, %p79
      %p81 = scmp.ne.s32.totalorder %s67, %s68
      %p82 = scmp.eq.s32.totalorder %s22, 1
      %p83 = por %p81, %p82
      %p85 = scmp.ne.s32.totalorder %s68, %s84
      %p86 = scmp.eq.s32.totalorder %s22, 0
      %p87 = por %p85, %p86
      %s89 = sadd.s32 %s88, 1
      %p92 = scmp.eq.s32.totalorder %s16, 1
      %p93 = scmp.ne.s32.totalorder %s88, %s90
      %p94 = scmp.eq.s32.totalorder %s16, 0
      %p95 = por %p93, %p94
      %p96 = scmp.ne.s32.totalorder %s88, %s90
      %p97 = scmp.eq.s32.totalorder %s21, 1
      %p98 = por %p96, %p97
      %p99 = scmp.ne.s32.totalorder %s90, %s91
      %p100 = scmp.eq.s32.totalorder %s21, 0
      %p101 = por %p99, %p100
      %p102 = scmp.ne.s32.totalorder %s90, %s91
      %p103 = scmp.eq.s32.totalorder %s22, 1
      %p104 = por %p102, %p103
      %p106 = scmp.ne.s32.totalorder %s91, %s105
      %p107 = scmp.eq.s32.totalorder %s22, 0
      %p108 = por %p106, %p107
      %s109 = ssub.s32 %s23, %s35
      %s110 = ssub.s32 %s24, %s31
      %s111 = sor.u32 %s109, %s110
      %p112 = scmp.eq.s32.totalorder %s111, 0
      %s114 = sadd.s32 %s113, 1
      %s115 = scalar_select %p112, %s113, %s114
      %p118 = pneg %p112
      %p119 = scmp.eq.s32.totalorder %s16, 1
      %p120 = por %p118, %p119
      %p121 = scmp.ne.s32.totalorder %s113, %s116
      %p122 = scmp.eq.s32.totalorder %s16, 0
      %p123 = por %p121, %p122
      %p124 = scmp.ne.s32.totalorder %s113, %s116
      %p125 = scmp.eq.s32.totalorder %s21, 1
      %p126 = por %p124, %p125
      %p127 = scmp.ne.s32.totalorder %s116, %s117
      %p128 = scmp.eq.s32.totalorder %s21, 0
      %p129 = por %p127, %p128
      %p130 = scmp.ne.s32.totalorder %s116, %s117
      %p131 = scmp.eq.s32.totalorder %s22, 1
      %p132 = por %p130, %p131
      %p134 = scmp.ne.s32.totalorder %s117, %s133
      %p135 = scmp.eq.s32.totalorder %s22, 0
      %p136 = por %p134, %p135
      %p137 = scmp.le.s32.totalorder 1, %s16
      %p138 = scmp.lt.s32.totalorder %s16, 3
      %p139 = pnand %p137, %p138
      %p140 = pneg %p139
      // Predicated region
      $region9: #{tpu_custom_call.1} parent=5 // pred_check
        _
      $region10: #{tpu_custom_call.1} parent=5 // pred_check_branch
        %142 = sbr.rel (%p139) target = $region12
      $region11: #{tpu_custom_call.1} parent=5 // pred_region
        %s143 = ssub.s32 %s16, 1
        // Predicated region
        $region13: #{tpu_custom_call.1} parent=11 // pred_check
          %p144 = pneg %p80
        $region14: #{tpu_custom_call.1} parent=11 // pred_check_branch
          %146 = sbr.rel (%p144) target = $region16
        $region15: #{tpu_custom_call.1} parent=11 // pred_region
          %148 = vsyncadd [#allocation6], 0
          %s149 = smul.addr %s26, 4
          %s150 = scalar_lea.hbm %s1, %s149
          %s151 = sshll.u32 %s150, 4
          %s152 = int_to_ptr.hbm [resolvable:$true] %s151
          %s153 = sshll.u32 [#allocation5], 4
          %s154 = int_to_ptr.vmem [resolvable:$true] %s153
          %159 = dma.hbm_to_vmem [thread:$0]  %s152, 256, %s154, [#allocation6], 64, 64, 4
        $region16: #{tpu_custom_call.1} parent=11 // pred_fallthru
          _
        // Predicated region
        $region17: #{tpu_custom_call.1} parent=11 // pred_check
          %p160 = pneg %p101
        $region18: #{tpu_custom_call.1} parent=11 // pred_check_branch
          %162 = sbr.rel (%p160) target = $region20
        $region19: #{tpu_custom_call.1} parent=11 // pred_region
          _
        $region20: #{tpu_custom_call.1} parent=11 // pred_fallthru
          _
      $region12: #{tpu_custom_call.1} parent=5 // pred_fallthru
        _
      %p163 = scmp.lt.s32.totalorder %s16, 2
      // Predicated region
      $region21: #{tpu_custom_call.1} parent=5 // pred_check
        %p164 = pneg %p163
      $region22: #{tpu_custom_call.1} parent=5 // pred_check_branch
        %166 = sbr.rel (%p164) target = $region24
      $region23: #{tpu_custom_call.1} parent=5 // pred_region
        // Predicated region
        $region25: #{tpu_custom_call.1} parent=23 // pred_check
          %p167 = pneg %p48
        $region26: #{tpu_custom_call.1} parent=23 // pred_check_branch
          %169 = sbr.rel (%p167) target = $region28
        $region27: #{tpu_custom_call.1} parent=23 // pred_region
          %s170 = sand.u32 %s38, 1
          %s171 = scalar_lea.sflag [#allocation3], %s170
          %s172 = sand.u32 %s38, 1
          %s173 = smul.addr %s172, 16
          %s174 = scalar_lea.vmem [#allocation2], %s173
          %176 = vsyncadd %s171, 0
          %s177 = smul.addr %s23, 4
          %s178 = smul.addr %s177, 4
          %s179 = scalar_lea.hbm %s0, %s178
          %s180 = sshll.u32 %s179, 4
          %s181 = int_to_ptr.hbm [resolvable:$true] %s180
          %s182 = sshll.u32 %s174, 4
          %s183 = int_to_ptr.vmem [resolvable:$true] %s182
          %188 = dma.hbm_to_vmem [thread:$0]  %s181, 256, %s183, %s171, 128, 128, 8
        $region28: #{tpu_custom_call.1} parent=23 // pred_fallthru
          _
      $region24: #{tpu_custom_call.1} parent=5 // pred_fallthru
        _
      %p189 = scmp.le.s32.totalorder 1, %s16
      %p190 = scmp.lt.s32.totalorder %s16, 3
      %p191 = pnand %p189, %p190
      %p192 = pneg %p191
      // Predicated region
      $region29: #{tpu_custom_call.1} parent=5 // pred_check
        _
      $region30: #{tpu_custom_call.1} parent=5 // pred_check_branch
        %194 = sbr.rel (%p191) target = $region32
      $region31: #{tpu_custom_call.1} parent=5 // pred_region
        %s195 = ssub.s32 %s16, 1
        %s196 = sand.u32 %s41, 1
        %s197 = scalar_lea.sflag [#allocation3], %s196
        %s198 = sand.u32 %s41, 1
        %s199 = smul.addr %s198, 16
        %s200 = scalar_lea.vmem [#allocation2], %s199
        // Predicated region
        $region33: #{tpu_custom_call.1} parent=31 // pred_check
          %p201 = pneg %p54
        $region34: #{tpu_custom_call.1} parent=31 // pred_check_branch
          %203 = sbr.rel (%p201) target = $region36
        $region35: #{tpu_custom_call.1} parent=31 // pred_region
          %205 = dma.done %s197, 256
        $region36: #{tpu_custom_call.1} parent=31 // pred_fallthru
          _
        // Predicated region
        $region37: #{tpu_custom_call.1} parent=31 // pred_check
          %p206 = pneg %p80
        $region38: #{tpu_custom_call.1} parent=31 // pred_check_branch
          %208 = sbr.rel (%p206) target = $region40
        $region39: #{tpu_custom_call.1} parent=31 // pred_region
          %210 = dma.done [#allocation6], 256
        $region40: #{tpu_custom_call.1} parent=31 // pred_fallthru
          _
        %s211 = sand.u32 %s41, 1
        %s212 = scalar_lea.sflag [#allocation3], %s211
        %s213 = sand.u32 %s41, 1
        %s214 = smul.addr %s213, 16
        %s215 = scalar_lea.vmem [#allocation2], %s214
        %p216 = pneg %p54
        %p217 = pneg %p51
        %p218 = pneg %p80
        %p219 = pneg %p77
        %p220 = pneg %p101
        %p221 = pneg %p98
        %p222 = pneg %p129
        %p223 = pneg %p126
        %s224 = sand.u32 %s116, 1
        %s225 = scalar_lea.sflag [#allocation4], %s224
        %s226 = sand.u32 %s116, 1
        %s227 = smul.addr %s226, 4
        %s228 = scalar_lea.vmem [#allocation7], %s227
        %v230 = vld [vmem:[%s200] sm:$0xf]
        %v231 = vld [vmem:[%s200 + $0x8] sm:$0xf]
        %v232 = vld [vmem:[#allocation5] sm:$0xf]
        %v233 = vld [vmem:[%s200] sm:$0xff]
        %v234 = vld [vmem:[%s200 + $0x8] sm:$0xff]
        %s235 = scalar_lea.vmem [#allocation5], 4
        %v236 = vld [vmem:[%s235] sm:$0xf]
        %v239 = vunpack.c.l.b16 %v233
        %v240 = vunpack.c.h.b16 %v233
        %v241 = vunpack.c.l.b16 %v234
        %v242 = vunpack.c.h.b16 %v234
        %v243 = vpack.c.b16 %v241, %v239
        %v244 = vpack.c.b16 %v242, %v240
        %245 = vrot.lane.b32.xlu0 %v243, 127
        %v246 = vpop.permute.xlu0 %245
        %247 = vrot.lane.b32.xlu0 %v244, 127
        %v248 = vpop.permute.xlu0 %247
        %vm249 = vcmask 1039360
        %v250 = vsel %vm249, %v246, %v248
        %vm252 = vcmask 130048
        %v254 = vsel %vm252, %v236, 0
        %256 = vmatpush.bf16.msra.mxu0 0
        %257 = vmatpush.bf16.msra.mxu0 0
        %258 = vmatpush.bf16.msra.mxu0 0
        %259 = vmatpush.bf16.msra.mxu0 0
        %260 = vmatpush.bf16.msra.mxu0 0
        %261 = vmatpush.bf16.msra.mxu0 0
        %262 = vmatpush.bf16.msra.mxu0 0
        %263 = vmatpush.bf16.msra.mxu0 %v250
        %264 = vmatmul.bf16.gmra.mxu0 %v254
        %v265 = vpop.f32.mrf.mxu0
        %v266 = vadd.f32 0.0, %v265
        %v267 = vpop.f32.mrf.mxu0
        %268 = vdwg.mxu0
        %v271 = vunpack.c.l.b16 %v230
        %v272 = vunpack.c.l.b16 %v231
        %v273 = vpack.c.b16 %v272, %v271
        %v276 = vsel %vm252, %v232, 0
        %278 = vmatpush.bf16.msra.mxu0 0
        %279 = vmatpush.bf16.msra.mxu0 0
        %280 = vmatpush.bf16.msra.mxu0 0
        %281 = vmatpush.bf16.msra.mxu0 0
        %282 = vmatpush.bf16.msra.mxu0 0
        %283 = vmatpush.bf16.msra.mxu0 0
        %284 = vmatpush.bf16.msra.mxu0 0
        %285 = vmatpush.bf16.msra.mxu0 %v273
        %286 = vmatmul.bf16.gmra.mxu0 %v276
        %v287 = vpop.f32.mrf.mxu0
        %v288 = vadd.f32 %v266, %v287
        %v289 = vpop.f32.mrf.mxu0
        %290 = vdwg.mxu0
        %s291 = scalar_lea.vmem [#allocation5], 8
        %v292 = vld [vmem:[%s291] sm:$0xf]
        %293 = vrot.lane.b32.xlu0 %v243, 119
        %v294 = vpop.permute.xlu0 %293
        %295 = vrot.lane.b32.xlu0 %v244, 119
        %v296 = vpop.permute.xlu0 %295
        %vm297 = vcmask 973824
        %v298 = vsel %vm297, %v294, %v296
        %v301 = vsel %vm252, %v292, 0
        %303 = vmatpush.bf16.msra.mxu0 0
        %304 = vmatpush.bf16.msra.mxu0 0
        %305 = vmatpush.bf16.msra.mxu0 0
        %306 = vmatpush.bf16.msra.mxu0 0
        %307 = vmatpush.bf16.msra.mxu0 0
        %308 = vmatpush.bf16.msra.mxu0 0
        %309 = vmatpush.bf16.msra.mxu0 0
        %310 = vmatpush.bf16.msra.mxu0 %v298
        %311 = vmatmul.bf16.gmra.mxu0 %v301
        %v312 = vpop.f32.mrf.mxu0
        %v313 = vadd.f32 0.0, %v312
        %v314 = vpop.f32.mrf.mxu0
        %315 = vdwg.mxu0
        %v316 = vadd.f32 %v288, %v313
        %s317 = scalar_lea.vmem [#allocation5], 12
        %v318 = vld [vmem:[%s317] sm:$0xf]
        %319 = vrot.lane.b32.xlu0 %v243, 118
        %v320 = vpop.permute.xlu0 %319
        %321 = vrot.lane.b32.xlu0 %v244, 118
        %v322 = vpop.permute.xlu0 %321
        %vm323 = vcmask 965632
        %v324 = vsel %vm323, %v320, %v322
        %v327 = vsel %vm252, %v318, 0
        %329 = vmatpush.bf16.msra.mxu0 0
        %330 = vmatpush.bf16.msra.mxu0 0
        %331 = vmatpush.bf16.msra.mxu0 0
        %332 = vmatpush.bf16.msra.mxu0 0
        %333 = vmatpush.bf16.msra.mxu0 0
        %334 = vmatpush.bf16.msra.mxu0 0
        %335 = vmatpush.bf16.msra.mxu0 0
        %336 = vmatpush.bf16.msra.mxu0 %v324
        %337 = vmatmul.bf16.gmra.mxu0 %v327
        %v338 = vpop.f32.mrf.mxu0
        %v339 = vadd.f32 0.0, %v338
        %v340 = vpop.f32.mrf.mxu0
        %341 = vdwg.mxu0
        %v342 = vadd.f32 %v316, %v339
        %v343 = vld [vmem:[%s2] sm:$0x1]
        %v345 = vperm.slane %v343, 0
        %v347 = vmul.f32 %v342, %v345
        %348 = vadd.xlane.f32.xlu0 %v347
        %v349 = vpop.xlane.xlu0 %348
        %v350 = vmul.f32 %v349, 0.015625
        %v351 = vsub.f32 %v342, %v350
        %v352 = vmul.f32 %v351, %v345
        %v353 = vmul.f32 %v352, %v352
        %354 = vadd.xlane.f32.xlu0 %v353
        %v355 = vpop.xlane.xlu0 %354
        %v356 = vmul.f32 %v355, 0.015625
        %v357 = vadd.f32 %v356, 1e-05
        %v358 = vrsqrt.pop %v357
        %v359 = vmul.f32 %v358, %v357
        %v360 = vmul.f32 %v359, %v358
        %v361 = vmul.f32 0.5, %v360
        %v362 = vsub.f32 1.5, %v361
        %v363 = vmul.f32 %v358, %v362
        %vm364 = vweird.f32 %v357
        %vm365 = vweird.f32 %v358
        %vm366 = vmor %vm364, %vm365
        %v367 = vsel %vm366, %v358, %v363
        %v368 = vmul.f32 %v352, %v367
        %v369 = vmul.f32 %v368, 0.2
        %v370 = vmax.f32 %v368, %v369
        %v371 = vpack.c.bf16 %v370, %v370
        %372 = vst [vmem:[%s228] sm:$0xf] %v371
        %s373 = sand.u32 %s116, 1
        %s374 = scalar_lea.sflag [#allocation4], %s373
        %s375 = sand.u32 %s116, 1
        %s376 = smul.addr %s375, 4
        %s377 = scalar_lea.vmem [#allocation7], %s376
        // Predicated region
        $region41: #{tpu_custom_call.1} parent=31 // pred_check
          %p378 = pneg %p126
        $region42: #{tpu_custom_call.1} parent=31 // pred_check_branch
          %380 = sbr.rel (%p378) target = $region44
        $region43: #{tpu_custom_call.1} parent=31 // pred_region
          %382 = vsyncadd %s374, 0
          %s383 = sadd.s32 %s26, %s25
          %s384 = smul.addr %s383, 4
          %s385 = scalar_lea.hbm %s3, %s384
          %s387 = sshll.u32 %s377, 4
          %s388 = int_to_ptr.vmem [resolvable:$true] %s387
          %s389 = sshll.u32 %s385, 4
          %s390 = int_to_ptr.hbm [resolvable:$true] %s389
          %392 = dma.vmem_to_hbm [thread:$0]  %s388, 64, %s390, %s374
        $region44: #{tpu_custom_call.1} parent=31 // pred_fallthru
          _
      $region32: #{tpu_custom_call.1} parent=5 // pred_fallthru
        _
      %p393 = scmp.le.s32.totalorder 2, %s16
      // Predicated region
      $region45: #{tpu_custom_call.1} parent=5 // pred_check
        %p394 = pneg %p393
      $region46: #{tpu_custom_call.1} parent=5 // pred_check_branch
        %396 = sbr.rel (%p394) target = $region48
      $region47: #{tpu_custom_call.1} parent=5 // pred_region
        %s397 = ssub.s32 %s16, 2
        // Predicated region
        $region49: #{tpu_custom_call.1} parent=47 // pred_check
          %p398 = pneg %p132
        $region50: #{tpu_custom_call.1} parent=47 // pred_check_branch
          %400 = sbr.rel (%p398) target = $region52
        $region51: #{tpu_custom_call.1} parent=47 // pred_region
          %s401 = sand.u32 %s117, 1
          %s402 = scalar_lea.sflag [#allocation4], %s401
          %s403 = sand.u32 %s117, 1
          %s404 = smul.addr %s403, 4
          %s405 = scalar_lea.vmem [#allocation7], %s404
          %407 = dma.done %s402, 64
        $region52: #{tpu_custom_call.1} parent=47 // pred_fallthru
          _
      $region48: #{tpu_custom_call.1} parent=5 // pred_fallthru
        _
    $region6: #{tpu_custom_call.1} parent=1 // loop_footer
      %s20 = sadd.s32 1, %s16
    $region7: #{tpu_custom_call.1} parent=1 // loop_footer_branch
      %15 = sbr.rel target = $region3
    $region8: #{tpu_custom_call.1} parent=1 // loop_exit
      _
    %408 = vsyncpa [#allocation3], 1
    %s409 = scalar_lea.sflag [#allocation3], 1
    %410 = vsyncpa %s409, 1
    %411 = vsyncpa [#allocation6], 1
    %412 = vsyncpa [#allocation4], 1
    %s413 = scalar_lea.sflag [#allocation4], 1
    %414 = vsyncpa %s413, 1

</llo_original>
